<compile_context>
chip_gen: v6e
topology: v6e:2x2x1
jax: 0.10.0
libtpu: 0.0.40
codegen_flags: <defaults>
</compile_context>

<pallas_src>
import functools

import jax
import jax.numpy as jnp
import numpy as np
from jax.experimental import pallas as pl
from jax.experimental.pallas import tpu as pltpu


def _round_up(a, m):
    return ((a + m - 1) // m) * m


def synergy_kernel(x_ref, m_ref,
                   w1_ref, b1_ref, w2_ref, b2_ref,
                   wtf_ref, btf_ref,
                   w3_ref, b3_ref, w4_ref, b4_ref,
                   out_ref, *, num_treatments, rep_dim):
    """One batch tile (bm rows) of the CODEXSynergyModel forward pass."""
    x = x_ref[...]                                                   # (bm, F)

    # ---- encoder: Linear + ReLU, Linear + ReLU ----
    emb = jnp.maximum(
        jnp.dot(x, w1_ref[...], preferred_element_type=jnp.float32) + b1_ref[...], 0.0)
    emb = jnp.maximum(
        jnp.dot(emb, w2_ref[...], preferred_element_type=jnp.float32) + b2_ref[...], 0.0)

    # ---- all T per-treatment Linear+ReLU layers fused into one matmul ----
    rep = jnp.maximum(
        jnp.dot(emb, wtf_ref[...], preferred_element_type=jnp.float32) + btf_ref[...],
        0.0)                                                         # (bm, T*H2)

    # ---- masked / gated accumulation (mask precomputed as f32 0/1) ----
    m = m_ref[...]                                                   # (bm, T)
    latent = m[:, 0:1] * rep[:, 0:rep_dim]
    for t in range(1, num_treatments):                               # static unroll, T small
        latent = latent + m[:, t:t + 1] * rep[:, t * rep_dim:(t + 1) * rep_dim]

    # ---- decoder: Linear + ReLU, then H3->1 Linear computed transposed ----
    h = jnp.maximum(
        jnp.dot(latent, w3_ref[...], preferred_element_type=jnp.float32) + b3_ref[...],
        0.0)                                                         # (bm, H3)
    # w4_ref is (8, H3) with identical rows; contract its H3 axis against h's
    # H3 axis (q·kᵀ-style matmul) so the result is lane-dense along bm.
    out8 = jax.lax.dot_general(
        w4_ref[...], h, (((1,), (1,)), ((), ())),
        preferred_element_type=jnp.float32)                          # (8, bm)
    out_ref[...] = (out8[0:1, :] + b4_ref[...])[None].astype(out_ref.dtype)  # (1, 1, bm)


def codex_synergy_forward(x, trt, params, *, bm=None):
    """x: [B, F] f32, trt: [B, K] int32, params: dict of weights -> [B, 1] f32."""
    B, F = x.shape
    w1, b1, w2, b2, wt, bt, w3, b3, w4, b4 = (
        params["w1"], params["b1"], params["w2"], params["b2"],
        params["wt"], params["bt"], params["w3"], params["b3"],
        params["w4"], params["b4"])
    T, H1, H2 = wt.shape
    H3 = w3.shape[1]

    # ---- plain-JAX glue ---------------------------------------------------
    # Per-row treatment hit plus the GLOBAL whole-batch gate `count > 1`
    # (mirrors torch's `if torch.sum(mask) > 1`).  Must stay global, so it is
    # computed here, before any batch tiling / padding.
    t_ids = jnp.arange(T, dtype=trt.dtype)
    row_hit = jnp.any(trt[:, :, None] == t_ids[None, None, :], axis=1)       # [B, T]
    gate = jnp.sum(row_hit.astype(jnp.int32), axis=0) > 1                    # [T]
    mask = jnp.where(row_hit & gate[None, :], 1.0, 0.0).astype(jnp.float32)  # [B, T]

    # Fuse the T per-treatment weights into a single [H1, T*H2] matmul.
    wtf = jnp.transpose(wt, (1, 0, 2)).reshape(H1, T * H2)
    btf = bt.reshape(1, T * H2)
    # Final H3->1 weights as a row, replicated over 8 sublanes for a clean
    # full-tile transposed matmul in the kernel.
    w4r = jnp.tile(w4.reshape(1, H3), (8, 1))

    # ---- batch tiling -----------------------------------------------------
    if bm is None:
        if B <= 8:
            bm = 8
        else:
            # Big tiles to amortise per-grid-step overhead, but keep >=2 tiles
            # so both TensorCores on v7x get work; cap at 512 rows.
            bm = min(512, _round_up((B + 1) // 2, 8))
    bm = max(8, _round_up(bm, 8))
    B_pad = _round_up(B, bm)
    if B_pad != B:
        x = jnp.pad(x, ((0, B_pad - B), (0, 0)))
        mask = jnp.pad(mask, ((0, B_pad - B), (0, 0)))
    n_tiles = B_pad // bm

    tile2 = lambda i: (i, 0)          # batch-tiled 2-D arrays
    full2 = lambda i: (0, 0)          # grid-invariant 2-D weights / biases

    kernel = functools.partial(synergy_kernel, num_treatments=T, rep_dim=H2)

    out = pl.pallas_call(
        kernel,
        out_shape=jax.ShapeDtypeStruct((n_tiles, 1, bm), jnp.float32),
        grid=(n_tiles,),
        in_specs=[
            pl.BlockSpec((bm, F), tile2),      # x     (batch-tiled)
            pl.BlockSpec((bm, T), tile2),      # mask  (batch-tiled)
            pl.BlockSpec(w1.shape, full2),
            pl.BlockSpec(b1.shape, full2),
            pl.BlockSpec(w2.shape, full2),
            pl.BlockSpec(b2.shape, full2),
            pl.BlockSpec(wtf.shape, full2),
            pl.BlockSpec(btf.shape, full2),
            pl.BlockSpec(w3.shape, full2),
            pl.BlockSpec(b3.shape, full2),
            pl.BlockSpec(w4r.shape, full2),
            pl.BlockSpec(b4.shape, full2),
        ],
        out_specs=pl.BlockSpec((1, 1, bm), lambda i: (i, 0, 0)),   # lane-dense output
        compiler_params=pltpu.CompilerParams(
            dimension_semantics=("parallel",)),
    )(x, mask, w1, b1, w2, b2, wtf, btf, w3, b3, w4r, b4)

    return out.reshape(B_pad, 1)[:B]


def reference_forward(x, trt, params):
    """Pure-JAX reference mirroring the PyTorch forward (batch_norm=False, dropout=None)."""
    relu = lambda v: jnp.maximum(v, 0.0)
    w1, b1, w2, b2, wt, bt, w3, b3, w4, b4 = (
        params["w1"], params["b1"], params["w2"], params["b2"],
        params["wt"], params["bt"], params["w3"], params["b3"],
        params["w4"], params["b4"])
    T = wt.shape[0]
    emb = relu(x @ w1 + b1)
    emb = relu(emb @ w2 + b2)
    latent = jnp.zeros((x.shape[0], wt.shape[2]), jnp.float32)
    for t in range(T):
        row_mask = jnp.any(trt == t, axis=1)
        gate = jnp.sum(row_mask) > 1
        rep = relu(emb @ wt[t] + bt[t])
        m = (row_mask & gate).astype(jnp.float32)[:, None]
        latent = latent + m * rep
    h = relu(latent @ w3 + b3)
    return h @ w4 + b4


if __name__ == "__main__":
    # Small shapes: batch=16, in_features=16, num_nodes=(32,32,32,32),
    # num_treatments=3, treatment matrix has K=2 ids per sample.
    B, F, K = 16, 16, 2
    H0, H1, H2, H3 = 32, 32, 32, 32
    T = 3

    key = jax.random.PRNGKey(0)
    keys = jax.random.split(key, 12)

    def winit(k, shape):
        return (0.1 * jax.random.normal(k, shape)).astype(jnp.float32)

    params = dict(
        w1=winit(keys[0], (F, H0)),  b1=winit(keys[1], (1, H0)),
        w2=winit(keys[2], (H0, H1)), b2=winit(keys[3], (1, H1)),
        wt=winit(keys[4], (T, H1, H2)), bt=winit(keys[5], (T, 1, H2)),
        w3=winit(keys[6], (H2, H3)), b3=winit(keys[7], (1, H3)),
        w4=winit(keys[8], (H3, 1)),  b4=winit(keys[9], (1, 1)),
    )

    x = jax.random.normal(keys[10], (B, F), dtype=jnp.float32)
    trt = jax.random.randint(keys[11], (B, K), 0, T, dtype=jnp.int32)

    out = codex_synergy_forward(x, trt, params)
    out = jax.block_until_ready(out)

    ref = reference_forward(x, trt, params)
    assert out.shape == (B, 1)
    np.testing.assert_allclose(np.asarray(out), np.asarray(ref), rtol=1e-5, atol=1e-5)

    print("KERNEL_OK")
</pallas_src>

<mosaic_0001>
module attributes {stable_mosaic.version = 11 : i64} {
  func.func @synergy_kernel(%arg0: i32, %arg1: memref<8x16xf32, #tpu.memory_space<vmem>>, %arg2: memref<8x3xf32, #tpu.memory_space<vmem>>, %arg3: memref<16x32xf32, #tpu.memory_space<vmem>>, %arg4: memref<1x32xf32, #tpu.memory_space<vmem>>, %arg5: memref<32x32xf32, #tpu.memory_space<vmem>>, %arg6: memref<1x32xf32, #tpu.memory_space<vmem>>, %arg7: memref<32x96xf32, #tpu.memory_space<vmem>>, %arg8: memref<1x96xf32, #tpu.memory_space<vmem>>, %arg9: memref<32x32xf32, #tpu.memory_space<vmem>>, %arg10: memref<1x32xf32, #tpu.memory_space<vmem>>, %arg11: memref<8x32xf32, #tpu.memory_space<vmem>>, %arg12: memref<1x1xf32, #tpu.memory_space<vmem>>, %arg13: memref<1x1x8xf32, #tpu.memory_space<vmem>>) attributes {dimension_semantics = [#tpu.dimension_semantics<parallel>], iteration_bounds = array<i64: 2>, scalar_prefetch = 0 : i64, scratch_operands = 0 : i64, tpu.core_type = #tpu.core_type<tc>, window_params = [{transform_indices = @transform_0, window_bounds = array<i64: 8, 16>}, {transform_indices = @transform_1, window_bounds = array<i64: 8, 3>}, {pipeline_mode = #tpu.pipeline_mode<synchronous>, transform_indices = @transform_2, window_bounds = array<i64: 16, 32>}, {pipeline_mode = #tpu.pipeline_mode<synchronous>, transform_indices = @transform_3, window_bounds = array<i64: 1, 32>}, {pipeline_mode = #tpu.pipeline_mode<synchronous>, transform_indices = @transform_4, window_bounds = array<i64: 32, 32>}, {pipeline_mode = #tpu.pipeline_mode<synchronous>, transform_indices = @transform_5, window_bounds = array<i64: 1, 32>}, {pipeline_mode = #tpu.pipeline_mode<synchronous>, transform_indices = @transform_6, window_bounds = array<i64: 32, 96>}, {pipeline_mode = #tpu.pipeline_mode<synchronous>, transform_indices = @transform_7, window_bounds = array<i64: 1, 96>}, {pipeline_mode = #tpu.pipeline_mode<synchronous>, transform_indices = @transform_8, window_bounds = array<i64: 32, 32>}, {pipeline_mode = #tpu.pipeline_mode<synchronous>, transform_indices = @transform_9, window_bounds = array<i64: 1, 32>}, {pipeline_mode = #tpu.pipeline_mode<synchronous>, transform_indices = @transform_10, window_bounds = array<i64: 8, 32>}, {pipeline_mode = #tpu.pipeline_mode<synchronous>, transform_indices = @transform_11, window_bounds = array<i64: 1, 1>}, {transform_indices = @transform_12, window_bounds = array<i64: 1, 1, 8>}]} {
    %c0 = arith.constant 0 : index
    %c0_0 = arith.constant 0 : index
    %0 = vector.load %arg1[%c0, %c0_0] : memref<8x16xf32, #tpu.memory_space<vmem>>, vector<8x16xf32>
    %c0_1 = arith.constant 0 : index
    %c0_2 = arith.constant 0 : index
    %1 = vector.load %arg3[%c0_1, %c0_2] : memref<16x32xf32, #tpu.memory_space<vmem>>, vector<16x32xf32>
    %cst = arith.constant dense<0.000000e+00> : vector<8x32xf32>
    %2 = tpu.matmul %0, %1, %cst {dimension_numbers = #tpu.dot_dimension_numbers<[1], [0], [0], [1], [0, 0, 1, 1], [], []>} : vector<8x16xf32>, vector<16x32xf32>, vector<8x32xf32> -> vector<8x32xf32>
    %c0_3 = arith.constant 0 : index
    %c0_4 = arith.constant 0 : index
    %3 = vector.load %arg4[%c0_3, %c0_4] : memref<1x32xf32, #tpu.memory_space<vmem>>, vector<1x32xf32>
    %4 = vector.broadcast %3 : vector<1x32xf32> to vector<8x32xf32>
    %5 = arith.addf %2, %4 : vector<8x32xf32>
    %cst_5 = arith.constant 0.000000e+00 : f32
    %6 = vector.broadcast %cst_5 : f32 to vector<8x32xf32>
    %7 = arith.maximumf %5, %6 : vector<8x32xf32>
    %c0_6 = arith.constant 0 : index
    %c0_7 = arith.constant 0 : index
    %8 = vector.load %arg5[%c0_6, %c0_7] : memref<32x32xf32, #tpu.memory_space<vmem>>, vector<32x32xf32>
    %cst_8 = arith.constant dense<0.000000e+00> : vector<8x32xf32>
    %9 = tpu.matmul %7, %8, %cst_8 {dimension_numbers = #tpu.dot_dimension_numbers<[1], [0], [0], [1], [0, 0, 1, 1], [], []>} : vector<8x32xf32>, vector<32x32xf32>, vector<8x32xf32> -> vector<8x32xf32>
    %c0_9 = arith.constant 0 : index
    %c0_10 = arith.constant 0 : index
    %10 = vector.load %arg6[%c0_9, %c0_10] : memref<1x32xf32, #tpu.memory_space<vmem>>, vector<1x32xf32>
    %11 = vector.broadcast %10 : vector<1x32xf32> to vector<8x32xf32>
    %12 = arith.addf %9, %11 : vector<8x32xf32>
    %cst_11 = arith.constant 0.000000e+00 : f32
    %13 = vector.broadcast %cst_11 : f32 to vector<8x32xf32>
    %14 = arith.maximumf %12, %13 : vector<8x32xf32>
    %c0_12 = arith.constant 0 : index
    %c0_13 = arith.constant 0 : index
    %15 = vector.load %arg7[%c0_12, %c0_13] : memref<32x96xf32, #tpu.memory_space<vmem>>, vector<32x96xf32>
    %cst_14 = arith.constant dense<0.000000e+00> : vector<8x96xf32>
    %16 = tpu.matmul %14, %15, %cst_14 {dimension_numbers = #tpu.dot_dimension_numbers<[1], [0], [0], [1], [0, 0, 1, 1], [], []>} : vector<8x32xf32>, vector<32x96xf32>, vector<8x96xf32> -> vector<8x96xf32>
    %c0_15 = arith.constant 0 : index
    %c0_16 = arith.constant 0 : index
    %17 = vector.load %arg8[%c0_15, %c0_16] : memref<1x96xf32, #tpu.memory_space<vmem>>, vector<1x96xf32>
    %18 = vector.broadcast %17 : vector<1x96xf32> to vector<8x96xf32>
    %19 = arith.addf %16, %18 : vector<8x96xf32>
    %cst_17 = arith.constant 0.000000e+00 : f32
    %20 = vector.broadcast %cst_17 : f32 to vector<8x96xf32>
    %21 = arith.maximumf %19, %20 : vector<8x96xf32>
    %c0_18 = arith.constant 0 : index
    %c0_19 = arith.constant 0 : index
    %22 = vector.load %arg2[%c0_18, %c0_19] : memref<8x3xf32, #tpu.memory_space<vmem>>, vector<8x3xf32>
    %23 = vector.extract_strided_slice %22 {offsets = [0, 0], sizes = [8, 1], strides = [1, 1]} : vector<8x3xf32> to vector<8x1xf32>
    %24 = vector.extract_strided_slice %21 {offsets = [0, 0], sizes = [8, 32], strides = [1, 1]} : vector<8x96xf32> to vector<8x32xf32>
    %25 = vector.broadcast %23 : vector<8x1xf32> to vector<8x32xf32>
    %26 = arith.mulf %25, %24 : vector<8x32xf32>
    %27 = vector.extract_strided_slice %22 {offsets = [0, 1], sizes = [8, 1], strides = [1, 1]} : vector<8x3xf32> to vector<8x1xf32>
    %28 = vector.extract_strided_slice %21 {offsets = [0, 32], sizes = [8, 32], strides = [1, 1]} : vector<8x96xf32> to vector<8x32xf32>
    %29 = vector.broadcast %27 : vector<8x1xf32> to vector<8x32xf32>
    %30 = arith.mulf %29, %28 : vector<8x32xf32>
    %31 = arith.addf %26, %30 : vector<8x32xf32>
    %32 = vector.extract_strided_slice %22 {offsets = [0, 2], sizes = [8, 1], strides = [1, 1]} : vector<8x3xf32> to vector<8x1xf32>
    %33 = vector.extract_strided_slice %21 {offsets = [0, 64], sizes = [8, 32], strides = [1, 1]} : vector<8x96xf32> to vector<8x32xf32>
    %34 = vector.broadcast %32 : vector<8x1xf32> to vector<8x32xf32>
    %35 = arith.mulf %34, %33 : vector<8x32xf32>
    %36 = arith.addf %31, %35 : vector<8x32xf32>
    %c0_20 = arith.constant 0 : index
    %c0_21 = arith.constant 0 : index
    %37 = vector.load %arg9[%c0_20, %c0_21] : memref<32x32xf32, #tpu.memory_space<vmem>>, vector<32x32xf32>
    %cst_22 = arith.constant dense<0.000000e+00> : vector<8x32xf32>
    %38 = tpu.matmul %36, %37, %cst_22 {dimension_numbers = #tpu.dot_dimension_numbers<[1], [0], [0], [1], [0, 0, 1, 1], [], []>} : vector<8x32xf32>, vector<32x32xf32>, vector<8x32xf32> -> vector<8x32xf32>
    %c0_23 = arith.constant 0 : index
    %c0_24 = arith.constant 0 : index
    %39 = vector.load %arg10[%c0_23, %c0_24] : memref<1x32xf32, #tpu.memory_space<vmem>>, vector<1x32xf32>
    %40 = vector.broadcast %39 : vector<1x32xf32> to vector<8x32xf32>
    %41 = arith.addf %38, %40 : vector<8x32xf32>
    %cst_25 = arith.constant 0.000000e+00 : f32
    %42 = vector.broadcast %cst_25 : f32 to vector<8x32xf32>
    %43 = arith.maximumf %41, %42 : vector<8x32xf32>
    %c0_26 = arith.constant 0 : index
    %c0_27 = arith.constant 0 : index
    %44 = vector.load %arg11[%c0_26, %c0_27] : memref<8x32xf32, #tpu.memory_space<vmem>>, vector<8x32xf32>
    %cst_28 = arith.constant dense<0.000000e+00> : vector<8x8xf32>
    %45 = tpu.matmul %44, %43, %cst_28 {dimension_numbers = #tpu.dot_dimension_numbers<[1], [1], [0], [0], [0, 0, 1, 0], [], []>} : vector<8x32xf32>, vector<8x32xf32>, vector<8x8xf32> -> vector<8x8xf32>
    %46 = vector.extract_strided_slice %45 {offsets = [0, 0], sizes = [1, 8], strides = [1, 1]} : vector<8x8xf32> to vector<1x8xf32>
    %c0_29 = arith.constant 0 : index
    %c0_30 = arith.constant 0 : index
    %47 = vector.load %arg12[%c0_29, %c0_30] : memref<1x1xf32, #tpu.memory_space<vmem>>, vector<1x1xf32>
    %48 = vector.broadcast %47 : vector<1x1xf32> to vector<1x8xf32>
    %49 = arith.addf %46, %48 : vector<1x8xf32>
    %50 = vector.shape_cast %49 : vector<1x8xf32> to vector<1x1x8xf32>
    %c0_31 = arith.constant 0 : index
    %c0_32 = arith.constant 0 : index
    %c0_33 = arith.constant 0 : index
    %51 = vector.load %arg13[%c0_31, %c0_32, %c0_33] : memref<1x1x8xf32, #tpu.memory_space<vmem>>, vector<1x1x8xf32>
    tpu.vector_store %arg13[%c0_31, %c0_32, %c0_33], %50 {strides = array<i32>} : memref<1x1x8xf32, #tpu.memory_space<vmem>>, vector<1x1x8xf32>,
    return
  }
  func.func @transform_0(%arg0: i32) -> (i32, i32) {
    %c0_i32 = arith.constant 0 : i32
    %c0_i32_0 = arith.constant 0 : i32
    return %arg0, %c0_i32 : i32, i32
  }
  func.func @transform_1(%arg0: i32) -> (i32, i32) {
    %c0_i32 = arith.constant 0 : i32
    %c0_i32_0 = arith.constant 0 : i32
    return %arg0, %c0_i32 : i32, i32
  }
  func.func @transform_2(%arg0: i32) -> (i32, i32) {
    %c0_i32 = arith.constant 0 : i32
    %c0_i32_0 = arith.constant 0 : i32
    %c0_i32_1 = arith.constant 0 : i32
    return %c0_i32, %c0_i32_0 : i32, i32
  }
  func.func @transform_3(%arg0: i32) -> (i32, i32) {
    %c0_i32 = arith.constant 0 : i32
    %c0_i32_0 = arith.constant 0 : i32
    %c0_i32_1 = arith.constant 0 : i32
    return %c0_i32, %c0_i32_0 : i32, i32
  }
  func.func @transform_4(%arg0: i32) -> (i32, i32) {
    %c0_i32 = arith.constant 0 : i32
    %c0_i32_0 = arith.constant 0 : i32
    %c0_i32_1 = arith.constant 0 : i32
    return %c0_i32, %c0_i32_0 : i32, i32
  }
  func.func @transform_5(%arg0: i32) -> (i32, i32) {
    %c0_i32 = arith.constant 0 : i32
    %c0_i32_0 = arith.constant 0 : i32
    %c0_i32_1 = arith.constant 0 : i32
    return %c0_i32, %c0_i32_0 : i32, i32
  }
  func.func @transform_6(%arg0: i32) -> (i32, i32) {
    %c0_i32 = arith.constant 0 : i32
    %c0_i32_0 = arith.constant 0 : i32
    %c0_i32_1 = arith.constant 0 : i32
    return %c0_i32, %c0_i32_0 : i32, i32
  }
  func.func @transform_7(%arg0: i32) -> (i32, i32) {
    %c0_i32 = arith.constant 0 : i32
    %c0_i32_0 = arith.constant 0 : i32
    %c0_i32_1 = arith.constant 0 : i32
    return %c0_i32, %c0_i32_0 : i32, i32
  }
  func.func @transform_8(%arg0: i32) -> (i32, i32) {
    %c0_i32 = arith.constant 0 : i32
    %c0_i32_0 = arith.constant 0 : i32
    %c0_i32_1 = arith.constant 0 : i32
    return %c0_i32, %c0_i32_0 : i32, i32
  }
  func.func @transform_9(%arg0: i32) -> (i32, i32) {
    %c0_i32 = arith.constant 0 : i32
    %c0_i32_0 = arith.constant 0 : i32
    %c0_i32_1 = arith.constant 0 : i32
    return %c0_i32, %c0_i32_0 : i32, i32
  }
  func.func @transform_10(%arg0: i32) -> (i32, i32) {
    %c0_i32 = arith.constant 0 : i32
    %c0_i32_0 = arith.constant 0 : i32
    %c0_i32_1 = arith.constant 0 : i32
    return %c0_i32, %c0_i32_0 : i32, i32
  }
  func.func @transform_11(%arg0: i32) -> (i32, i32) {
    %c0_i32 = arith.constant 0 : i32
    %c0_i32_0 = arith.constant 0 : i32
    %c0_i32_1 = arith.constant 0 : i32
    return %c0_i32, %c0_i32_0 : i32, i32
  }
  func.func @transform_12(%arg0: i32) -> (i32, i32, i32) {
    %c0_i32 = arith.constant 0 : i32
    %c0_i32_0 = arith.constant 0 : i32
    %c0_i32_1 = arith.constant 0 : i32
    return %arg0, %c0_i32, %c0_i32_0 : i32, i32, i32
  }
}

</mosaic_0001>

<llo_original>
// kernel: tpu_custom_call.1
$region0: #{tpu_custom_call.1}
  #allocation0 [shape = 'u32[]', space=smem, size = 0x4, offset = 0x4, fixed_abs, tag = 'smem constant byte address 0x4 - core index']
  #allocation1 [shape = 'u32[144,128]{1,0:T(1,128)}', space=vmem, size = 0x12000, scoped, tag = 'internal scratch']
  #allocation2 [shape = 'f32[1,1]{1,0:T(1,128)S(1)}', space=vmem, size = 0x200, scoped, tag = 'scoped memory for tpu_custom_call.1']
  %s0 = inlined_call_operand.hbm [shape: f32[16,16], index: 0, kind: input, shape index: {}]
  %s1 = inlined_call_operand.vmem [shape: f32[16,3], index: 1, kind: input, shape index: {}]
  %s2 = inlined_call_operand.hbm [shape: f32[16,32], index: 2, kind: input, shape index: {}]
  %s3 = inlined_call_operand.hbm [shape: f32[1,32], index: 3, kind: input, shape index: {}]
  %s4 = inlined_call_operand.hbm [shape: f32[32,32], index: 4, kind: input, shape index: {}]
  %s5 = inlined_call_operand.hbm [shape: f32[1,32], index: 5, kind: input, shape index: {}]
  %s6 = inlined_call_operand.vmem [shape: f32[32,96], index: 6, kind: input, shape index: {}]
  %s7 = inlined_call_operand.hbm [shape: f32[1,96], index: 7, kind: input, shape index: {}]
  %s8 = inlined_call_operand.hbm [shape: f32[32,32], index: 8, kind: input, shape index: {}]
  %s9 = inlined_call_operand.hbm [shape: f32[1,32], index: 9, kind: input, shape index: {}]
  %s10 = inlined_call_operand.vmem [shape: f32[8,32], index: 10, kind: input, shape index: {}]
  %s11 = inlined_call_operand.<no memory space> [shape: f32[1,1], index: 11, kind: input, shape index: {}]
  %s12 = inlined_call_operand.hbm [shape: f32[2,1,8], index: 12, kind: output, shape index: {}]
  %s13 = sld [smem:[#allocation0]]
  $region113: #{tpu_custom_call.1} parent=0
    _
  %s15 = ssub.s32 1, %s13
  %s16 = scalar_select 0, %s15, %s13
  %v17 = vstv %s11
  %18 = vst [vmem:[#allocation2] sm:$0x1] %v17
  $region1: #{tpu_custom_call.1} parent=0
    #allocation3 [shape = 'u8[8192]{0}', space=vmem, size = 0x2000, scoped, tag = 'input window, operand 0']
    #allocation4 [shape = 's32[2]{0}', space=sflag, size = 0x8, scoped, tag = 'scoped memory for tpu_custom_call.1']
    #allocation5 [shape = 's32[2]{0}', space=sflag, size = 0x8, scoped, tag = 'scoped memory for tpu_custom_call.1']
    #allocation6 [shape = 'u8[8192]{0}', space=vmem, size = 0x2000, scoped, tag = 'input window, operand 2, single buffered']
    #allocation7 [shape = 's32[1]{0}', space=sflag, size = 0x4, scoped, tag = 'scoped memory for tpu_custom_call.1']
    #allocation8 [shape = 'u8[512]{0}', space=vmem, size = 0x400, scoped, tag = 'input window, operand 3, single buffered']
    #allocation9 [shape = 'u8[16384]{0}', space=vmem, size = 0x4000, scoped, tag = 'input window, operand 4, single buffered']
    #allocation10 [shape = 's32[1]{0}', space=sflag, size = 0x4, scoped, tag = 'scoped memory for tpu_custom_call.1']
    #allocation11 [shape = 'u8[512]{0}', space=vmem, size = 0x400, scoped, tag = 'input window, operand 5, single buffered']
    #allocation12 [shape = 'u8[512]{0}', space=vmem, size = 0x400, scoped, tag = 'input window, operand 7, single buffered']
    #allocation13 [shape = 's32[1]{0}', space=sflag, size = 0x4, scoped, tag = 'scoped memory for tpu_custom_call.1']
    #allocation14 [shape = 'u8[16384]{0}', space=vmem, size = 0x4000, scoped, tag = 'input window, operand 8, single buffered']
    #allocation15 [shape = 'u8[512]{0}', space=vmem, size = 0x400, scoped, tag = 'input window, operand 9, single buffered']
    #allocation16 [shape = 's32[1]{0}', space=sflag, size = 0x4, scoped, tag = 'scoped memory for tpu_custom_call.1']
    #allocation17 [shape = 'u8[1024]{0}', space=vmem, size = 0x400, scoped, tag = 'output window, operand 0']
    %19 = vsyncpa [#allocation4], 0
    %s20 = scalar_lea.sflag [#allocation4], 1
    %21 = vsyncpa %s20, 0
    %22 = vsyncpa [#allocation7], 0
    %23 = vsyncpa [#allocation10], 0
    %24 = vsyncpa [#allocation13], 0
    %25 = vsyncpa [#allocation16], 0
    %26 = vsyncpa [#allocation5], 0
    %s27 = scalar_lea.sflag [#allocation5], 1
    %28 = vsyncpa %s27, 0
    loop: start=0, step=1, limit=4
    $region2: #{tpu_custom_call.1} parent=1 // loop_pre_header
      _
    $region3: #{tpu_custom_call.1} parent=1 // loop_header
      %s30 = sphi 0, %s34
      %p31 = scmp.ge.s32.totalorder %s30, 4
      %s40 = sphi 0, %s42
      %s43 = sphi 0, %s40
      %s44 = sphi 0, %s43
      %s60 = sphi 0, %s44
      %s66 = sphi 0, %s68
      %s69 = sphi 0, %s66
      %s70 = sphi 0, %s69
      %s86 = sphi 0, %s70
      %s90 = sphi 0, %s90
      %s92 = sphi 0, %s90
      %s93 = sphi 0, %s92
      %s107 = sphi 0, %s93
      %s111 = sphi 0, %s111
      %s113 = sphi 0, %s111
      %s114 = sphi 0, %s113
      %s128 = sphi 0, %s114
      %s132 = sphi 0, %s132
      %s134 = sphi 0, %s132
      %s135 = sphi 0, %s134
      %s149 = sphi 0, %s135
      %s153 = sphi 0, %s153
      %s155 = sphi 0, %s153
      %s156 = sphi 0, %s155
      %s170 = sphi 0, %s156
      %s174 = sphi 0, %s174
      %s176 = sphi 0, %s174
      %s177 = sphi 0, %s176
      %s191 = sphi 0, %s177
      %s195 = sphi 0, %s195
      %s197 = sphi 0, %s195
      %s198 = sphi 0, %s197
      %s212 = sphi 0, %s198
      %s216 = sphi 0, %s216
      %s218 = sphi 0, %s216
      %s219 = sphi 0, %s218
      %s233 = sphi 0, %s219
      %s237 = sphi 0, %s237
      %s239 = sphi 0, %s237
      %s240 = sphi 0, %s239
      %s254 = sphi 0, %s240
      %s258 = sphi 0, %s258
      %s260 = sphi 0, %s258
      %s261 = sphi 0, %s260
      %s275 = sphi 0, %s261
      %s279 = sphi 0, %s279
      %s281 = sphi 0, %s279
      %s282 = sphi 0, %s281
      %s296 = sphi 0, %s282
      %s302 = sphi 0, %s304
      %s305 = sphi 0, %s302
      %s306 = sphi 0, %s305
      %s322 = sphi 0, %s306
    $region4: #{tpu_custom_call.1} parent=1 // loop_header_branch
      %33 = sbr.rel (%p31) target = $region8
    $region5: #{tpu_custom_call.1} parent=1 // loop_body
      %s35 = ssub.s32 %s30, 1
      %s36 = ssub.s32 %s30, 2
      %s37 = sadd.s32 %s30, 1
      %s38 = ssub.s32 %s30, %s37
      %p39 = scmp.eq.s32.totalorder %s38, 0
      %s41 = sadd.s32 %s40, 1
      %s42 = scalar_select %p39, %s40, %s41
      %p45 = pneg %p39
      %p46 = scmp.eq.s32.totalorder %s30, 1
      %p47 = por %p45, %p46
      %p48 = scmp.ne.s32.totalorder %s40, %s43
      %p49 = scmp.eq.s32.totalorder %s30, 0
      %p50 = por %p48, %p49
      %p51 = scmp.ne.s32.totalorder %s40, %s43
      %p52 = scmp.eq.s32.totalorder %s35, 1
      %p53 = por %p51, %p52
      %p54 = scmp.ne.s32.totalorder %s43, %s44
      %p55 = scmp.eq.s32.totalorder %s35, 0
      %p56 = por %p54, %p55
      %p57 = scmp.ne.s32.totalorder %s43, %s44
      %p58 = scmp.eq.s32.totalorder %s36, 1
      %p59 = por %p57, %p58
      %p61 = scmp.ne.s32.totalorder %s44, %s60
      %p62 = scmp.eq.s32.totalorder %s36, 0
      %p63 = por %p61, %p62
      %s64 = ssub.s32 %s30, %s37
      %p65 = scmp.eq.s32.totalorder %s64, 0
      %s67 = sadd.s32 %s66, 1
      %s68 = scalar_select %p65, %s66, %s67
      %p71 = pneg %p65
      %p72 = scmp.eq.s32.totalorder %s30, 1
      %p73 = por %p71, %p72
      %p74 = scmp.ne.s32.totalorder %s66, %s69
      %p75 = scmp.eq.s32.totalorder %s30, 0
      %p76 = por %p74, %p75
      %p77 = scmp.ne.s32.totalorder %s66, %s69
      %p78 = scmp.eq.s32.totalorder %s35, 1
      %p79 = por %p77, %p78
      %p80 = scmp.ne.s32.totalorder %s69, %s70
      %p81 = scmp.eq.s32.totalorder %s35, 0
      %p82 = por %p80, %p81
      %p83 = scmp.ne.s32.totalorder %s69, %s70
      %p84 = scmp.eq.s32.totalorder %s36, 1
      %p85 = por %p83, %p84
      %p87 = scmp.ne.s32.totalorder %s70, %s86
      %p88 = scmp.eq.s32.totalorder %s36, 0
      %p89 = por %p87, %p88
      %s91 = sadd.s32 %s90, 1
      %p94 = scmp.eq.s32.totalorder %s30, 1
      %p95 = scmp.ne.s32.totalorder %s90, %s92
      %p96 = scmp.eq.s32.totalorder %s30, 0
      %p97 = por %p95, %p96
      %p98 = scmp.ne.s32.totalorder %s90, %s92
      %p99 = scmp.eq.s32.totalorder %s35, 1
      %p100 = por %p98, %p99
      %p101 = scmp.ne.s32.totalorder %s92, %s93
      %p102 = scmp.eq.s32.totalorder %s35, 0
      %p103 = por %p101, %p102
      %p104 = scmp.ne.s32.totalorder %s92, %s93
      %p105 = scmp.eq.s32.totalorder %s36, 1
      %p106 = por %p104, %p105
      %p108 = scmp.ne.s32.totalorder %s93, %s107
      %p109 = scmp.eq.s32.totalorder %s36, 0
      %p110 = por %p108, %p109
      %s112 = sadd.s32 %s111, 1
      %p115 = scmp.eq.s32.totalorder %s30, 1
      %p116 = scmp.ne.s32.totalorder %s111, %s113
      %p117 = scmp.eq.s32.totalorder %s30, 0
      %p118 = por %p116, %p117
      %p119 = scmp.ne.s32.totalorder %s111, %s113
      %p120 = scmp.eq.s32.totalorder %s35, 1
      %p121 = por %p119, %p120
      %p122 = scmp.ne.s32.totalorder %s113, %s114
      %p123 = scmp.eq.s32.totalorder %s35, 0
      %p124 = por %p122, %p123
      %p125 = scmp.ne.s32.totalorder %s113, %s114
      %p126 = scmp.eq.s32.totalorder %s36, 1
      %p127 = por %p125, %p126
      %p129 = scmp.ne.s32.totalorder %s114, %s128
      %p130 = scmp.eq.s32.totalorder %s36, 0
      %p131 = por %p129, %p130
      %s133 = sadd.s32 %s132, 1
      %p136 = scmp.eq.s32.totalorder %s30, 1
      %p137 = scmp.ne.s32.totalorder %s132, %s134
      %p138 = scmp.eq.s32.totalorder %s30, 0
      %p139 = por %p137, %p138
      %p140 = scmp.ne.s32.totalorder %s132, %s134
      %p141 = scmp.eq.s32.totalorder %s35, 1
      %p142 = por %p140, %p141
      %p143 = scmp.ne.s32.totalorder %s134, %s135
      %p144 = scmp.eq.s32.totalorder %s35, 0
      %p145 = por %p143, %p144
      %p146 = scmp.ne.s32.totalorder %s134, %s135
      %p147 = scmp.eq.s32.totalorder %s36, 1
      %p148 = por %p146, %p147
      %p150 = scmp.ne.s32.totalorder %s135, %s149
      %p151 = scmp.eq.s32.totalorder %s36, 0
      %p152 = por %p150, %p151
      %s154 = sadd.s32 %s153, 1
      %p157 = scmp.eq.s32.totalorder %s30, 1
      %p158 = scmp.ne.s32.totalorder %s153, %s155
      %p159 = scmp.eq.s32.totalorder %s30, 0
      %p160 = por %p158, %p159
      %p161 = scmp.ne.s32.totalorder %s153, %s155
      %p162 = scmp.eq.s32.totalorder %s35, 1
      %p163 = por %p161, %p162
      %p164 = scmp.ne.s32.totalorder %s155, %s156
      %p165 = scmp.eq.s32.totalorder %s35, 0
      %p166 = por %p164, %p165
      %p167 = scmp.ne.s32.totalorder %s155, %s156
      %p168 = scmp.eq.s32.totalorder %s36, 1
      %p169 = por %p167, %p168
      %p171 = scmp.ne.s32.totalorder %s156, %s170
      %p172 = scmp.eq.s32.totalorder %s36, 0
      %p173 = por %p171, %p172
      %s175 = sadd.s32 %s174, 1
      %p178 = scmp.eq.s32.totalorder %s30, 1
      %p179 = scmp.ne.s32.totalorder %s174, %s176
      %p180 = scmp.eq.s32.totalorder %s30, 0
      %p181 = por %p179, %p180
      %p182 = scmp.ne.s32.totalorder %s174, %s176
      %p183 = scmp.eq.s32.totalorder %s35, 1
      %p184 = por %p182, %p183
      %p185 = scmp.ne.s32.totalorder %s176, %s177
      %p186 = scmp.eq.s32.totalorder %s35, 0
      %p187 = por %p185, %p186
      %p188 = scmp.ne.s32.totalorder %s176, %s177
      %p189 = scmp.eq.s32.totalorder %s36, 1
      %p190 = por %p188, %p189
      %p192 = scmp.ne.s32.totalorder %s177, %s191
      %p193 = scmp.eq.s32.totalorder %s36, 0
      %p194 = por %p192, %p193
      %s196 = sadd.s32 %s195, 1
      %p199 = scmp.eq.s32.totalorder %s30, 1
      %p200 = scmp.ne.s32.totalorder %s195, %s197
      %p201 = scmp.eq.s32.totalorder %s30, 0
      %p202 = por %p200, %p201
      %p203 = scmp.ne.s32.totalorder %s195, %s197
      %p204 = scmp.eq.s32.totalorder %s35, 1
      %p205 = por %p203, %p204
      %p206 = scmp.ne.s32.totalorder %s197, %s198
      %p207 = scmp.eq.s32.totalorder %s35, 0
      %p208 = por %p206, %p207
      %p209 = scmp.ne.s32.totalorder %s197, %s198
      %p210 = scmp.eq.s32.totalorder %s36, 1
      %p211 = por %p209, %p210
      %p213 = scmp.ne.s32.totalorder %s198, %s212
      %p214 = scmp.eq.s32.totalorder %s36, 0
      %p215 = por %p213, %p214
      %s217 = sadd.s32 %s216, 1
      %p220 = scmp.eq.s32.totalorder %s30, 1
      %p221 = scmp.ne.s32.totalorder %s216, %s218
      %p222 = scmp.eq.s32.totalorder %s30, 0
      %p223 = por %p221, %p222
      %p224 = scmp.ne.s32.totalorder %s216, %s218
      %p225 = scmp.eq.s32.totalorder %s35, 1
      %p226 = por %p224, %p225
      %p227 = scmp.ne.s32.totalorder %s218, %s219
      %p228 = scmp.eq.s32.totalorder %s35, 0
      %p229 = por %p227, %p228
      %p230 = scmp.ne.s32.totalorder %s218, %s219
      %p231 = scmp.eq.s32.totalorder %s36, 1
      %p232 = por %p230, %p231
      %p234 = scmp.ne.s32.totalorder %s219, %s233
      %p235 = scmp.eq.s32.totalorder %s36, 0
      %p236 = por %p234, %p235
      %s238 = sadd.s32 %s237, 1
      %p241 = scmp.eq.s32.totalorder %s30, 1
      %p242 = scmp.ne.s32.totalorder %s237, %s239
      %p243 = scmp.eq.s32.totalorder %s30, 0
      %p244 = por %p242, %p243
      %p245 = scmp.ne.s32.totalorder %s237, %s239
      %p246 = scmp.eq.s32.totalorder %s35, 1
      %p247 = por %p245, %p246
      %p248 = scmp.ne.s32.totalorder %s239, %s240
      %p249 = scmp.eq.s32.totalorder %s35, 0
      %p250 = por %p248, %p249
      %p251 = scmp.ne.s32.totalorder %s239, %s240
      %p252 = scmp.eq.s32.totalorder %s36, 1
      %p253 = por %p251, %p252
      %p255 = scmp.ne.s32.totalorder %s240, %s254
      %p256 = scmp.eq.s32.totalorder %s36, 0
      %p257 = por %p255, %p256
      %s259 = sadd.s32 %s258, 1
      %p262 = scmp.eq.s32.totalorder %s30, 1
      %p263 = scmp.ne.s32.totalorder %s258, %s260
      %p264 = scmp.eq.s32.totalorder %s30, 0
      %p265 = por %p263, %p264
      %p266 = scmp.ne.s32.totalorder %s258, %s260
      %p267 = scmp.eq.s32.totalorder %s35, 1
      %p268 = por %p266, %p267
      %p269 = scmp.ne.s32.totalorder %s260, %s261
      %p270 = scmp.eq.s32.totalorder %s35, 0
      %p271 = por %p269, %p270
      %p272 = scmp.ne.s32.totalorder %s260, %s261
      %p273 = scmp.eq.s32.totalorder %s36, 1
      %p274 = por %p272, %p273
      %p276 = scmp.ne.s32.totalorder %s261, %s275
      %p277 = scmp.eq.s32.totalorder %s36, 0
      %p278 = por %p276, %p277
      %s280 = sadd.s32 %s279, 1
      %p283 = scmp.eq.s32.totalorder %s30, 1
      %p284 = scmp.ne.s32.totalorder %s279, %s281
      %p285 = scmp.eq.s32.totalorder %s30, 0
      %p286 = por %p284, %p285
      %p287 = scmp.ne.s32.totalorder %s279, %s281
      %p288 = scmp.eq.s32.totalorder %s35, 1
      %p289 = por %p287, %p288
      %p290 = scmp.ne.s32.totalorder %s281, %s282
      %p291 = scmp.eq.s32.totalorder %s35, 0
      %p292 = por %p290, %p291
      %p293 = scmp.ne.s32.totalorder %s281, %s282
      %p294 = scmp.eq.s32.totalorder %s36, 1
      %p295 = por %p293, %p294
      %p297 = scmp.ne.s32.totalorder %s282, %s296
      %p298 = scmp.eq.s32.totalorder %s36, 0
      %p299 = por %p297, %p298
      %s300 = ssub.s32 %s30, %s37
      %p301 = scmp.eq.s32.totalorder %s300, 0
      %s303 = sadd.s32 %s302, 1
      %s304 = scalar_select %p301, %s302, %s303
      %p307 = pneg %p301
      %p308 = scmp.eq.s32.totalorder %s30, 1
      %p309 = por %p307, %p308
      %p310 = scmp.ne.s32.totalorder %s302, %s305
      %p311 = scmp.eq.s32.totalorder %s30, 0
      %p312 = por %p310, %p311
      %p313 = scmp.ne.s32.totalorder %s302, %s305
      %p314 = scmp.eq.s32.totalorder %s35, 1
      %p315 = por %p313, %p314
      %p316 = scmp.ne.s32.totalorder %s305, %s306
      %p317 = scmp.eq.s32.totalorder %s35, 0
      %p318 = por %p316, %p317
      %p319 = scmp.ne.s32.totalorder %s305, %s306
      %p320 = scmp.eq.s32.totalorder %s36, 1
      %p321 = por %p319, %p320
      %p323 = scmp.ne.s32.totalorder %s306, %s322
      %p324 = scmp.eq.s32.totalorder %s36, 0
      %p325 = por %p323, %p324
      %p326 = scmp.le.s32.totalorder 1, %s30
      %p327 = scmp.lt.s32.totalorder %s30, 3
      %p328 = pnand %p326, %p327
      %p329 = pneg %p328
      // Predicated region
      $region9: #{tpu_custom_call.1} parent=5 // pred_check
        _
      $region10: #{tpu_custom_call.1} parent=5 // pred_check_branch
        %331 = sbr.rel (%p328) target = $region12
      $region11: #{tpu_custom_call.1} parent=5 // pred_region
        %s332 = ssub.s32 %s30, 1
        // Predicated region
        $region13: #{tpu_custom_call.1} parent=11 // pred_check
          %p333 = pneg %p103
        $region14: #{tpu_custom_call.1} parent=11 // pred_check_branch
          %335 = sbr.rel (%p333) target = $region16
        $region15: #{tpu_custom_call.1} parent=11 // pred_region
          %s337 = ssub.s32 256, 256
          %338 = vsyncadd [#allocation7], %s337
          %s339 = sshll.u32 [#allocation6], 4
          %s340 = int_to_ptr.vmem [resolvable:$true] %s339
          %345 = dma.hbm_to_vmem [thread:$0]  %s2, 256, %s340, [#allocation7], 128, 128, 8
        $region16: #{tpu_custom_call.1} parent=11 // pred_fallthru
          _
        // Predicated region
        $region17: #{tpu_custom_call.1} parent=11 // pred_check
          %p346 = pneg %p124
        $region18: #{tpu_custom_call.1} parent=11 // pred_check_branch
          %348 = sbr.rel (%p346) target = $region20
        $region19: #{tpu_custom_call.1} parent=11 // pred_region
          %s350 = ssub.s32 16, 16
          %351 = vsyncadd [#allocation7], %s350
          %s353 = sshll.u32 [#allocation8], 4
          %s354 = int_to_ptr.vmem [resolvable:$true] %s353
          %356 = dma.hbm_to_vmem [thread:$0]  %s3, 16, %s354, [#allocation7]
        $region20: #{tpu_custom_call.1} parent=11 // pred_fallthru
          _
        // Predicated region
        $region21: #{tpu_custom_call.1} parent=11 // pred_check
          %p357 = pneg %p145
        $region22: #{tpu_custom_call.1} parent=11 // pred_check_branch
          %359 = sbr.rel (%p357) target = $region24
        $region23: #{tpu_custom_call.1} parent=11 // pred_region
          %s361 = ssub.s32 512, 512
          %362 = vsyncadd [#allocation10], %s361
          %s363 = sshll.u32 [#allocation9], 4
          %s364 = int_to_ptr.vmem [resolvable:$true] %s363
          %369 = dma.hbm_to_vmem [thread:$0]  %s4, 512, %s364, [#allocation10], 128, 128, 8
        $region24: #{tpu_custom_call.1} parent=11 // pred_fallthru
          _
        // Predicated region
        $region25: #{tpu_custom_call.1} parent=11 // pred_check
          %p370 = pneg %p166
        $region26: #{tpu_custom_call.1} parent=11 // pred_check_branch
          %372 = sbr.rel (%p370) target = $region28
        $region27: #{tpu_custom_call.1} parent=11 // pred_region
          %s374 = ssub.s32 16, 16
          %375 = vsyncadd [#allocation10], %s374
          %s377 = sshll.u32 [#allocation11], 4
          %s378 = int_to_ptr.vmem [resolvable:$true] %s377
          %380 = dma.hbm_to_vmem [thread:$0]  %s5, 16, %s378, [#allocation10]
        $region28: #{tpu_custom_call.1} parent=11 // pred_fallthru
          _
        // Predicated region
        $region29: #{tpu_custom_call.1} parent=11 // pred_check
          %p381 = pneg %p187
        $region30: #{tpu_custom_call.1} parent=11 // pred_check_branch
          %383 = sbr.rel (%p381) target = $region32
        $region31: #{tpu_custom_call.1} parent=11 // pred_region
          _
        $region32: #{tpu_custom_call.1} parent=11 // pred_fallthru
          _
        // Predicated region
        $region33: #{tpu_custom_call.1} parent=11 // pred_check
          %p384 = pneg %p208
        $region34: #{tpu_custom_call.1} parent=11 // pred_check_branch
          %386 = sbr.rel (%p384) target = $region36
        $region35: #{tpu_custom_call.1} parent=11 // pred_region
          %s388 = ssub.s32 16, 16
          %389 = vsyncadd [#allocation13], %s388
          %s391 = sshll.u32 [#allocation12], 4
          %s392 = int_to_ptr.vmem [resolvable:$true] %s391
          %394 = dma.hbm_to_vmem [thread:$0]  %s7, 16, %s392, [#allocation13]
        $region36: #{tpu_custom_call.1} parent=11 // pred_fallthru
          _
        // Predicated region
        $region37: #{tpu_custom_call.1} parent=11 // pred_check
          %p395 = pneg %p229
        $region38: #{tpu_custom_call.1} parent=11 // pred_check_branch
          %397 = sbr.rel (%p395) target = $region40
        $region39: #{tpu_custom_call.1} parent=11 // pred_region
          %s399 = ssub.s32 512, 512
          %400 = vsyncadd [#allocation13], %s399
          %s401 = sshll.u32 [#allocation14], 4
          %s402 = int_to_ptr.vmem [resolvable:$true] %s401
          %407 = dma.hbm_to_vmem [thread:$0]  %s8, 512, %s402, [#allocation13], 128, 128, 8
        $region40: #{tpu_custom_call.1} parent=11 // pred_fallthru
          _
        // Predicated region
        $region41: #{tpu_custom_call.1} parent=11 // pred_check
          %p408 = pneg %p250
        $region42: #{tpu_custom_call.1} parent=11 // pred_check_branch
          %410 = sbr.rel (%p408) target = $region44
        $region43: #{tpu_custom_call.1} parent=11 // pred_region
          %s412 = ssub.s32 16, 16
          %413 = vsyncadd [#allocation16], %s412
          %s415 = sshll.u32 [#allocation15], 4
          %s416 = int_to_ptr.vmem [resolvable:$true] %s415
          %418 = dma.hbm_to_vmem [thread:$0]  %s9, 16, %s416, [#allocation16]
        $region44: #{tpu_custom_call.1} parent=11 // pred_fallthru
          _
        // Predicated region
        $region45: #{tpu_custom_call.1} parent=11 // pred_check
          %p419 = pneg %p271
        $region46: #{tpu_custom_call.1} parent=11 // pred_check_branch
          %421 = sbr.rel (%p419) target = $region48
        $region47: #{tpu_custom_call.1} parent=11 // pred_region
          _
        $region48: #{tpu_custom_call.1} parent=11 // pred_fallthru
          _
        // Predicated region
        $region49: #{tpu_custom_call.1} parent=11 // pred_check
          %p422 = pneg %p292
        $region50: #{tpu_custom_call.1} parent=11 // pred_check_branch
          %424 = sbr.rel (%p422) target = $region52
        $region51: #{tpu_custom_call.1} parent=11 // pred_region
          _
        $region52: #{tpu_custom_call.1} parent=11 // pred_fallthru
          _
      $region12: #{tpu_custom_call.1} parent=5 // pred_fallthru
        _
      %p425 = scmp.lt.s32.totalorder %s30, 2
      // Predicated region
      $region53: #{tpu_custom_call.1} parent=5 // pred_check
        %p426 = pneg %p425
      $region54: #{tpu_custom_call.1} parent=5 // pred_check_branch
        %428 = sbr.rel (%p426) target = $region56
      $region55: #{tpu_custom_call.1} parent=5 // pred_region
        // Predicated region
        $region57: #{tpu_custom_call.1} parent=55 // pred_check
          %p429 = pneg %p50
        $region58: #{tpu_custom_call.1} parent=55 // pred_check_branch
          %431 = sbr.rel (%p429) target = $region60
        $region59: #{tpu_custom_call.1} parent=55 // pred_region
          %s432 = sand.u32 %s40, 1
          %s433 = scalar_lea.sflag [#allocation4], %s432
          %s434 = sand.u32 %s40, 1
          %s435 = smul.addr %s434, 8
          %s436 = scalar_lea.vmem [#allocation3], %s435
          %s438 = ssub.s32 128, 128
          %439 = vsyncadd %s433, %s438
          %s440 = smul.addr %s30, 128
          %s441 = scalar_lea.hbm %s0, %s440
          %s443 = sshll.u32 %s436, 4
          %s444 = int_to_ptr.vmem [resolvable:$true] %s443
          %446 = dma.hbm_to_vmem [thread:$0]  %s441, 128, %s444, %s433
        $region60: #{tpu_custom_call.1} parent=55 // pred_fallthru
          _
        // Predicated region
        $region61: #{tpu_custom_call.1} parent=55 // pred_check
          %p447 = pneg %p76
        $region62: #{tpu_custom_call.1} parent=55 // pred_check_branch
          %449 = sbr.rel (%p447) target = $region64
        $region63: #{tpu_custom_call.1} parent=55 // pred_region
          %p450 = scmp.lt.s32.totalorder %s30, 1
          %s451 = scalar_select %p450, %s30, 1
          %s452 = smul.addr %s451, 8
          %s453 = scalar_lea.vmem %s1, %s452
        $region64: #{tpu_custom_call.1} parent=55 // pred_fallthru
          _
      $region56: #{tpu_custom_call.1} parent=5 // pred_fallthru
        _
      %p454 = scmp.le.s32.totalorder 1, %s30
      %p455 = scmp.lt.s32.totalorder %s30, 3
      %p456 = pnand %p454, %p455
      %p457 = pneg %p456
      // Predicated region
      $region65: #{tpu_custom_call.1} parent=5 // pred_check
        _
      $region66: #{tpu_custom_call.1} parent=5 // pred_check_branch
        %459 = sbr.rel (%p456) target = $region68
      $region67: #{tpu_custom_call.1} parent=5 // pred_region
        %s460 = ssub.s32 %s30, 1
        %s461 = sand.u32 %s43, 1
        %s462 = scalar_lea.sflag [#allocation4], %s461
        %s463 = sand.u32 %s43, 1
        %s464 = smul.addr %s463, 8
        %s465 = scalar_lea.vmem [#allocation3], %s464
        // Predicated region
        $region69: #{tpu_custom_call.1} parent=67 // pred_check
          %p466 = pneg %p56
        $region70: #{tpu_custom_call.1} parent=67 // pred_check_branch
          %468 = sbr.rel (%p466) target = $region72
        $region71: #{tpu_custom_call.1} parent=67 // pred_region
          %469 = dma.done %s462, 128
        $region72: #{tpu_custom_call.1} parent=67 // pred_fallthru
          _
        // Predicated region
        $region73: #{tpu_custom_call.1} parent=67 // pred_check
          %p470 = pneg %p103
        $region74: #{tpu_custom_call.1} parent=67 // pred_check_branch
          %472 = sbr.rel (%p470) target = $region76
        $region75: #{tpu_custom_call.1} parent=67 // pred_region
          %473 = dma.done [#allocation7], 256
        $region76: #{tpu_custom_call.1} parent=67 // pred_fallthru
          _
        // Predicated region
        $region77: #{tpu_custom_call.1} parent=67 // pred_check
          %p474 = pneg %p124
        $region78: #{tpu_custom_call.1} parent=67 // pred_check_branch
          %476 = sbr.rel (%p474) target = $region80
        $region79: #{tpu_custom_call.1} parent=67 // pred_region
          %477 = dma.done [#allocation7], 16
        $region80: #{tpu_custom_call.1} parent=67 // pred_fallthru
          _
        // Predicated region
        $region81: #{tpu_custom_call.1} parent=67 // pred_check
          %p478 = pneg %p145
        $region82: #{tpu_custom_call.1} parent=67 // pred_check_branch
          %480 = sbr.rel (%p478) target = $region84
        $region83: #{tpu_custom_call.1} parent=67 // pred_region
          %481 = dma.done [#allocation10], 512
        $region84: #{tpu_custom_call.1} parent=67 // pred_fallthru
          _
        // Predicated region
        $region85: #{tpu_custom_call.1} parent=67 // pred_check
          %p482 = pneg %p166
        $region86: #{tpu_custom_call.1} parent=67 // pred_check_branch
          %484 = sbr.rel (%p482) target = $region88
        $region87: #{tpu_custom_call.1} parent=67 // pred_region
          %485 = dma.done [#allocation10], 16
        $region88: #{tpu_custom_call.1} parent=67 // pred_fallthru
          _
        // Predicated region
        $region89: #{tpu_custom_call.1} parent=67 // pred_check
          %p486 = pneg %p208
        $region90: #{tpu_custom_call.1} parent=67 // pred_check_branch
          %488 = sbr.rel (%p486) target = $region92
        $region91: #{tpu_custom_call.1} parent=67 // pred_region
          %489 = dma.done [#allocation13], 16
        $region92: #{tpu_custom_call.1} parent=67 // pred_fallthru
          _
        // Predicated region
        $region93: #{tpu_custom_call.1} parent=67 // pred_check
          %p490 = pneg %p229
        $region94: #{tpu_custom_call.1} parent=67 // pred_check_branch
          %492 = sbr.rel (%p490) target = $region96
        $region95: #{tpu_custom_call.1} parent=67 // pred_region
          %493 = dma.done [#allocation13], 512
        $region96: #{tpu_custom_call.1} parent=67 // pred_fallthru
          _
        // Predicated region
        $region97: #{tpu_custom_call.1} parent=67 // pred_check
          %p494 = pneg %p250
        $region98: #{tpu_custom_call.1} parent=67 // pred_check_branch
          %496 = sbr.rel (%p494) target = $region100
        $region99: #{tpu_custom_call.1} parent=67 // pred_region
          %497 = dma.done [#allocation16], 16
        $region100: #{tpu_custom_call.1} parent=67 // pred_fallthru
          _
        %s498 = sand.u32 %s43, 1
        %s499 = scalar_lea.sflag [#allocation4], %s498
        %s500 = sand.u32 %s43, 1
        %s501 = smul.addr %s500, 8
        %s502 = scalar_lea.vmem [#allocation3], %s501
        %p503 = pneg %p56
        %p504 = pneg %p53
        %p505 = scmp.lt.s32.totalorder %s35, 1
        %s506 = scalar_select %p505, %s35, 1
        %s507 = smul.addr %s506, 8
        %s508 = scalar_lea.vmem %s1, %s507
        %p509 = pneg %p82
        %p510 = pneg %p79
        %p511 = pneg %p103
        %p512 = pneg %p100
        %p513 = pneg %p124
        %p514 = pneg %p121
        %p515 = pneg %p145
        %p516 = pneg %p142
        %p517 = pneg %p166
        %p518 = pneg %p163
        %p519 = pneg %p187
        %p520 = pneg %p184
        %p521 = pneg %p208
        %p522 = pneg %p205
        %p523 = pneg %p229
        %p524 = pneg %p226
        %p525 = pneg %p250
        %p526 = pneg %p247
        %p527 = pneg %p271
        %p528 = pneg %p268
        %p529 = pneg %p292
        %p530 = pneg %p289
        %p531 = pneg %p318
        %p532 = pneg %p315
        %s533 = sand.u32 %s305, 1
        %s534 = scalar_lea.sflag [#allocation5], %s533
        %s535 = sand.u32 %s305, 1
        %s536 = scalar_lea.vmem [#allocation17], %s535
        %p537 = scmp.lt.s32.totalorder %s35, 1
        %s538 = scalar_select %p537, %s35, 1
        %s539 = smul.addr %s538, 8
        %s540 = scalar_lea.vmem %s1, %s539
        %v541 = vld [vmem:[%s465] sm:$0xff]
        %v542 = vld [vmem:[#allocation6] sm:$0xff]
        %v543 = vld [vmem:[#allocation6 + $0x8] sm:$0xff]
        %v544 = vld [vmem:[#allocation8] sm:$0x1]
        %v546 = vlaneseq
        %v547 = vshrl.u32 %v546, 7
        %v548 = vsub.s32 0, %v547
        %v549 = vrot.slane %v544, %v548
        %vm551 = vcmask 130048
        %v553 = vsel %vm551, %v541, 0
        %555 = vmatprep.subr.mxu0 0.0
        %556 = vmatpush1.msra.mxu0 0.0
        %557 = vmatprep.subr.mxu0 0.0
        %558 = vmatpush1.msra.mxu0 0.0
        %559 = vmatprep.subr.mxu0 0.0
        %560 = vmatpush1.msra.mxu0 0.0
        %561 = vmatprep.subr.mxu0 0.0
        %562 = vmatpush1.msra.mxu0 0.0
        %563 = vmatprep.subr.mxu0 0.0
        %564 = vmatpush1.msra.mxu0 0.0
        %565 = vmatprep.subr.mxu0 0.0
        %566 = vmatpush1.msra.mxu0 0.0
        %567 = vmatprep.subr.mxu0 0.0
        %568 = vmatpush1.msra.mxu0 0.0
        %569 = vmatprep.subr.mxu0 0.0
        %570 = vmatpush1.msra.mxu0 0.0
        %571 = vmatprep.subr.mxu0 0.0
        %572 = vmatpush1.msra.mxu0 0.0
        %573 = vmatprep.subr.mxu0 0.0
        %574 = vmatpush1.msra.mxu0 0.0
        %575 = vmatprep.subr.mxu0 0.0
        %576 = vmatpush1.msra.mxu0 0.0
        %577 = vmatprep.subr.mxu0 0.0
        %578 = vmatpush1.msra.mxu0 0.0
        %579 = vmatprep.subr.mxu0 0.0
        %580 = vmatpush1.msra.mxu0 0.0
        %581 = vmatprep.subr.mxu0 0.0
        %582 = vmatpush1.msra.mxu0 0.0
        %583 = vmatprep.subr.mxu0 0.0
        %584 = vmatpush1.msra.mxu0 %v543
        %585 = vmatprep.subr.mxu0 0.0
        %586 = vmatpush1.msra.mxu0 %v542
        %587 = vmatprep.subr.mxu0 0.0
        %588 = vmatpush2.msra.mxu0 0.0
        %589 = vmatprep.subr.mxu0 0.0
        %590 = vmatpush2.msra.mxu0 0.0
        %591 = vmatprep.subr.mxu0 0.0
        %592 = vmatpush2.msra.mxu0 0.0
        %593 = vmatprep.subr.mxu0 0.0
        %594 = vmatpush2.msra.mxu0 0.0
        %595 = vmatprep.subr.mxu0 0.0
        %596 = vmatpush2.msra.mxu0 0.0
        %597 = vmatprep.subr.mxu0 0.0
        %598 = vmatpush2.msra.mxu0 0.0
        %599 = vmatprep.subr.mxu0 0.0
        %600 = vmatpush2.msra.mxu0 0.0
        %601 = vmatprep.subr.mxu0 0.0
        %602 = vmatpush2.msra.mxu0 0.0
        %603 = vmatprep.subr.mxu0 0.0
        %604 = vmatpush2.msra.mxu0 0.0
        %605 = vmatprep.subr.mxu0 0.0
        %606 = vmatpush2.msra.mxu0 0.0
        %607 = vmatprep.subr.mxu0 0.0
        %608 = vmatpush2.msra.mxu0 0.0
        %609 = vmatprep.subr.mxu0 0.0
        %610 = vmatpush2.msra.mxu0 0.0
        %611 = vmatprep.subr.mxu0 0.0
        %612 = vmatpush2.msra.mxu0 0.0
        %613 = vmatprep.subr.mxu0 0.0
        %614 = vmatpush2.msra.mxu0 0.0
        %615 = vmatprep.subr.mxu0 0.0
        %616 = vmatpush2.msra.mxu0 0.0
        %617 = vmatprep.subr.mxu0 0.0
        %618 = vmatpush2.msra.mxu0 0.0
        %619 = vmatprep.mubr.f32.mxu0 0.0
        %620 = vmatmul.mubr.f32.gmra.mxu0 %v553
        %v621 = vpop.f32.mrf.mxu0
        %v622 = vadd.f32 %v549, %v621
        %v623 = vpop.f32.mrf.mxu0
        %624 = vdwg.mxu0
        %v625 = vmax.f32 %v622, 0.0
        %v626 = vld [vmem:[#allocation9] sm:$0xff]
        %v627 = vld [vmem:[#allocation9 + $0x8] sm:$0xff]
        %v628 = vld [vmem:[#allocation9 + $0x10] sm:$0xff]
        %v629 = vld [vmem:[#allocation9 + $0x18] sm:$0xff]
        %v630 = vld [vmem:[#allocation11] sm:$0x1]
        %v632 = vlaneseq
        %v633 = vshrl.u32 %v632, 7
        %v634 = vsub.s32 0, %v633
        %v635 = vrot.slane %v630, %v634
        %vm637 = vcmask 261120
        %v639 = vsel %vm637, %v625, 0
        %641 = vmatprep.subr.mxu0 0.0
        %642 = vmatpush1.msra.mxu0 0.0
        %643 = vmatprep.subr.mxu0 0.0
        %644 = vmatpush1.msra.mxu0 0.0
        %645 = vmatprep.subr.mxu0 0.0
        %646 = vmatpush1.msra.mxu0 0.0
        %647 = vmatprep.subr.mxu0 0.0
        %648 = vmatpush1.msra.mxu0 0.0
        %649 = vmatprep.subr.mxu0 0.0
        %650 = vmatpush1.msra.mxu0 0.0
        %651 = vmatprep.subr.mxu0 0.0
        %652 = vmatpush1.msra.mxu0 0.0
        %653 = vmatprep.subr.mxu0 0.0
        %654 = vmatpush1.msra.mxu0 0.0
        %655 = vmatprep.subr.mxu0 0.0
        %656 = vmatpush1.msra.mxu0 0.0
        %657 = vmatprep.subr.mxu0 0.0
        %658 = vmatpush1.msra.mxu0 0.0
        %659 = vmatprep.subr.mxu0 0.0
        %660 = vmatpush1.msra.mxu0 0.0
        %661 = vmatprep.subr.mxu0 0.0
        %662 = vmatpush1.msra.mxu0 0.0
        %663 = vmatprep.subr.mxu0 0.0
        %664 = vmatpush1.msra.mxu0 0.0
        %665 = vmatprep.subr.mxu0 0.0
        %666 = vmatpush1.msra.mxu0 %v629
        %667 = vmatprep.subr.mxu0 0.0
        %668 = vmatpush1.msra.mxu0 %v628
        %669 = vmatprep.subr.mxu0 0.0
        %670 = vmatpush1.msra.mxu0 %v627
        %671 = vmatprep.subr.mxu0 0.0
        %672 = vmatpush1.msra.mxu0 %v626
        %673 = vmatprep.subr.mxu0 0.0
        %674 = vmatpush2.msra.mxu0 0.0
        %675 = vmatprep.subr.mxu0 0.0
        %676 = vmatpush2.msra.mxu0 0.0
        %677 = vmatprep.subr.mxu0 0.0
        %678 = vmatpush2.msra.mxu0 0.0
        %679 = vmatprep.subr.mxu0 0.0
        %680 = vmatpush2.msra.mxu0 0.0
        %681 = vmatprep.subr.mxu0 0.0
        %682 = vmatpush2.msra.mxu0 0.0
        %683 = vmatprep.subr.mxu0 0.0
        %684 = vmatpush2.msra.mxu0 0.0
        %685 = vmatprep.subr.mxu0 0.0
        %686 = vmatpush2.msra.mxu0 0.0
        %687 = vmatprep.subr.mxu0 0.0
        %688 = vmatpush2.msra.mxu0 0.0
        %689 = vmatprep.subr.mxu0 0.0
        %690 = vmatpush2.msra.mxu0 0.0
        %691 = vmatprep.subr.mxu0 0.0
        %692 = vmatpush2.msra.mxu0 0.0
        %693 = vmatprep.subr.mxu0 0.0
        %694 = vmatpush2.msra.mxu0 0.0
        %695 = vmatprep.subr.mxu0 0.0
        %696 = vmatpush2.msra.mxu0 0.0
        %697 = vmatprep.subr.mxu0 0.0
        %698 = vmatpush2.msra.mxu0 0.0
        %699 = vmatprep.subr.mxu0 0.0
        %700 = vmatpush2.msra.mxu0 0.0
        %701 = vmatprep.subr.mxu0 0.0
        %702 = vmatpush2.msra.mxu0 0.0
        %703 = vmatprep.subr.mxu0 0.0
        %704 = vmatpush2.msra.mxu0 0.0
        %705 = vmatprep.mubr.f32.mxu0 0.0
        %706 = vmatmul.mubr.f32.gmra.mxu0 %v639
        %v707 = vpop.f32.mrf.mxu0
        %v708 = vadd.f32 %v635, %v707
        %v709 = vpop.f32.mrf.mxu0
        %710 = vdwg.mxu0
        %v711 = vmax.f32 %v708, 0.0
        %v712 = vld [vmem:[%s6] sm:$0xff]
        %v713 = vld [vmem:[%s6 + $0x8] sm:$0xff]
        %v714 = vld [vmem:[%s6 + $0x10] sm:$0xff]
        %v715 = vld [vmem:[%s6 + $0x18] sm:$0xff]
        %v716 = vld [vmem:[#allocation12] sm:$0x1]
        %v718 = vlaneseq
        %v719 = vshrl.u32 %v718, 7
        %v720 = vsub.s32 0, %v719
        %v721 = vrot.slane %v716, %v720
        %v724 = vsel %vm637, %v711, 0
        %726 = vmatprep.subr.mxu0 0.0
        %727 = vmatpush1.msra.mxu0 0.0
        %728 = vmatprep.subr.mxu0 0.0
        %729 = vmatpush1.msra.mxu0 0.0
        %730 = vmatprep.subr.mxu0 0.0
        %731 = vmatpush1.msra.mxu0 0.0
        %732 = vmatprep.subr.mxu0 0.0
        %733 = vmatpush1.msra.mxu0 0.0
        %734 = vmatprep.subr.mxu0 0.0
        %735 = vmatpush1.msra.mxu0 0.0
        %736 = vmatprep.subr.mxu0 0.0
        %737 = vmatpush1.msra.mxu0 0.0
        %738 = vmatprep.subr.mxu0 0.0
        %739 = vmatpush1.msra.mxu0 0.0
        %740 = vmatprep.subr.mxu0 0.0
        %741 = vmatpush1.msra.mxu0 0.0
        %742 = vmatprep.subr.mxu0 0.0
        %743 = vmatpush1.msra.mxu0 0.0
        %744 = vmatprep.subr.mxu0 0.0
        %745 = vmatpush1.msra.mxu0 0.0
        %746 = vmatprep.subr.mxu0 0.0
        %747 = vmatpush1.msra.mxu0 0.0
        %748 = vmatprep.subr.mxu0 0.0
        %749 = vmatpush1.msra.mxu0 0.0
        %750 = vmatprep.subr.mxu0 0.0
        %751 = vmatpush1.msra.mxu0 %v715
        %752 = vmatprep.subr.mxu0 0.0
        %753 = vmatpush1.msra.mxu0 %v714
        %754 = vmatprep.subr.mxu0 0.0
        %755 = vmatpush1.msra.mxu0 %v713
        %756 = vmatprep.subr.mxu0 0.0
        %757 = vmatpush1.msra.mxu0 %v712
        %758 = vmatprep.subr.mxu0 0.0
        %759 = vmatpush2.msra.mxu0 0.0
        %760 = vmatprep.subr.mxu0 0.0
        %761 = vmatpush2.msra.mxu0 0.0
        %762 = vmatprep.subr.mxu0 0.0
        %763 = vmatpush2.msra.mxu0 0.0
        %764 = vmatprep.subr.mxu0 0.0
        %765 = vmatpush2.msra.mxu0 0.0
        %766 = vmatprep.subr.mxu0 0.0
        %767 = vmatpush2.msra.mxu0 0.0
        %768 = vmatprep.subr.mxu0 0.0
        %769 = vmatpush2.msra.mxu0 0.0
        %770 = vmatprep.subr.mxu0 0.0
        %771 = vmatpush2.msra.mxu0 0.0
        %772 = vmatprep.subr.mxu0 0.0
        %773 = vmatpush2.msra.mxu0 0.0
        %774 = vmatprep.subr.mxu0 0.0
        %775 = vmatpush2.msra.mxu0 0.0
        %776 = vmatprep.subr.mxu0 0.0
        %777 = vmatpush2.msra.mxu0 0.0
        %778 = vmatprep.subr.mxu0 0.0
        %779 = vmatpush2.msra.mxu0 0.0
        %780 = vmatprep.subr.mxu0 0.0
        %781 = vmatpush2.msra.mxu0 0.0
        %782 = vmatprep.subr.mxu0 0.0
        %783 = vmatpush2.msra.mxu0 0.0
        %784 = vmatprep.subr.mxu0 0.0
        %785 = vmatpush2.msra.mxu0 0.0
        %786 = vmatprep.subr.mxu0 0.0
        %787 = vmatpush2.msra.mxu0 0.0
        %788 = vmatprep.subr.mxu0 0.0
        %789 = vmatpush2.msra.mxu0 0.0
        %790 = vmatprep.mubr.f32.mxu0 0.0
        %791 = vmatmul.mubr.f32.gmra.mxu0 %v724
        %v792 = vpop.f32.mrf.mxu0
        %v793 = vadd.f32 %v721, %v792
        %v794 = vpop.f32.mrf.mxu0
        %795 = vdwg.mxu0
        %v796 = vmax.f32 %v793, 0.0
        %v797 = vld [vmem:[%s540] sm:$0xff]
        %799 = vset.pattern.permute.xlu0 0
        %800 = vperm.xlu0 %799, %v797
        %v801 = vpop.permute.xlu0 %800
        %v803 = vmul.f32 %v801, %v796
        %804 = vset.pattern.permute.xlu0 1
        %805 = vperm.xlu0 %804, %v797
        %v806 = vpop.permute.xlu0 %805
        %v808 = vmul.f32 %v806, %v796
        %810 = vrot.lane.b32.xlu0 %v808, 96
        %v811 = vpop.permute.xlu0 %810
        %v813 = vadd.f32 %v803, %v811
        %814 = vset.pattern.permute.xlu0 2
        %815 = vperm.xlu0 %814, %v797
        %v816 = vpop.permute.xlu0 %815
        %v818 = vmul.f32 %v816, %v796
        %820 = vrot.lane.b32.xlu0 %v818, 64
        %v821 = vpop.permute.xlu0 %820
        %v823 = vadd.f32 %v813, %v821
        %v824 = vld [vmem:[#allocation14] sm:$0xff]
        %v825 = vld [vmem:[#allocation14 + $0x8] sm:$0xff]
        %v826 = vld [vmem:[#allocation14 + $0x10] sm:$0xff]
        %v827 = vld [vmem:[#allocation14 + $0x18] sm:$0xff]
        %v828 = vld [vmem:[#allocation15] sm:$0x1]
        %v830 = vlaneseq
        %v831 = vshrl.u32 %v830, 7
        %v832 = vsub.s32 0, %v831
        %v833 = vrot.slane %v828, %v832
        %v836 = vsel %vm637, %v823, 0
        %838 = vmatprep.subr.mxu0 0.0
        %839 = vmatpush1.msra.mxu0 0.0
        %840 = vmatprep.subr.mxu0 0.0
        %841 = vmatpush1.msra.mxu0 0.0
        %842 = vmatprep.subr.mxu0 0.0
        %843 = vmatpush1.msra.mxu0 0.0
        %844 = vmatprep.subr.mxu0 0.0
        %845 = vmatpush1.msra.mxu0 0.0
        %846 = vmatprep.subr.mxu0 0.0
        %847 = vmatpush1.msra.mxu0 0.0
        %848 = vmatprep.subr.mxu0 0.0
        %849 = vmatpush1.msra.mxu0 0.0
        %850 = vmatprep.subr.mxu0 0.0
        %851 = vmatpush1.msra.mxu0 0.0
        %852 = vmatprep.subr.mxu0 0.0
        %853 = vmatpush1.msra.mxu0 0.0
        %854 = vmatprep.subr.mxu0 0.0
        %855 = vmatpush1.msra.mxu0 0.0
        %856 = vmatprep.subr.mxu0 0.0
        %857 = vmatpush1.msra.mxu0 0.0
        %858 = vmatprep.subr.mxu0 0.0
        %859 = vmatpush1.msra.mxu0 0.0
        %860 = vmatprep.subr.mxu0 0.0
        %861 = vmatpush1.msra.mxu0 0.0
        %862 = vmatprep.subr.mxu0 0.0
        %863 = vmatpush1.msra.mxu0 %v827
        %864 = vmatprep.subr.mxu0 0.0
        %865 = vmatpush1.msra.mxu0 %v826
        %866 = vmatprep.subr.mxu0 0.0
        %867 = vmatpush1.msra.mxu0 %v825
        %868 = vmatprep.subr.mxu0 0.0
        %869 = vmatpush1.msra.mxu0 %v824
        %870 = vmatprep.subr.mxu0 0.0
        %871 = vmatpush2.msra.mxu0 0.0
        %872 = vmatprep.subr.mxu0 0.0
        %873 = vmatpush2.msra.mxu0 0.0
        %874 = vmatprep.subr.mxu0 0.0
        %875 = vmatpush2.msra.mxu0 0.0
        %876 = vmatprep.subr.mxu0 0.0
        %877 = vmatpush2.msra.mxu0 0.0
        %878 = vmatprep.subr.mxu0 0.0
        %879 = vmatpush2.msra.mxu0 0.0
        %880 = vmatprep.subr.mxu0 0.0
        %881 = vmatpush2.msra.mxu0 0.0
        %882 = vmatprep.subr.mxu0 0.0
        %883 = vmatpush2.msra.mxu0 0.0
        %884 = vmatprep.subr.mxu0 0.0
        %885 = vmatpush2.msra.mxu0 0.0
        %886 = vmatprep.subr.mxu0 0.0
        %887 = vmatpush2.msra.mxu0 0.0
        %888 = vmatprep.subr.mxu0 0.0
        %889 = vmatpush2.msra.mxu0 0.0
        %890 = vmatprep.subr.mxu0 0.0
        %891 = vmatpush2.msra.mxu0 0.0
        %892 = vmatprep.subr.mxu0 0.0
        %893 = vmatpush2.msra.mxu0 0.0
        %894 = vmatprep.subr.mxu0 0.0
        %895 = vmatpush2.msra.mxu0 0.0
        %896 = vmatprep.subr.mxu0 0.0
        %897 = vmatpush2.msra.mxu0 0.0
        %898 = vmatprep.subr.mxu0 0.0
        %899 = vmatpush2.msra.mxu0 0.0
        %900 = vmatprep.subr.mxu0 0.0
        %901 = vmatpush2.msra.mxu0 0.0
        %902 = vmatprep.mubr.f32.mxu0 0.0
        %903 = vmatmul.mubr.f32.gmra.mxu0 %v836
        %v904 = vpop.f32.mrf.mxu0
        %v905 = vadd.f32 %v833, %v904
        %v906 = vpop.f32.mrf.mxu0
        %907 = vdwg.mxu0
        %v908 = vmax.f32 %v905, 0.0
        %v909 = vld [vmem:[%s10] sm:$0xff]
        %v911 = vsel %vm637, %v909, 0
        %v914 = vsel %vm637, %v908, 0
        %916 = vmatprep.subr.mxu0 0.0
        %917 = vmatpush1.xpose.msra.mxu0 0.0
        %918 = vmatprep.subr.mxu0 0.0
        %919 = vmatpush1.xpose.msra.mxu0 0.0
        %920 = vmatprep.subr.mxu0 0.0
        %921 = vmatpush1.xpose.msra.mxu0 0.0
        %922 = vmatprep.subr.mxu0 0.0
        %923 = vmatpush1.xpose.msra.mxu0 0.0
        %924 = vmatprep.subr.mxu0 0.0
        %925 = vmatpush1.xpose.msra.mxu0 0.0
        %926 = vmatprep.subr.mxu0 0.0
        %927 = vmatpush1.xpose.msra.mxu0 0.0
        %928 = vmatprep.subr.mxu0 0.0
        %929 = vmatpush1.xpose.msra.mxu0 0.0
        %930 = vmatprep.subr.mxu0 0.0
        %931 = vmatpush1.xpose.msra.mxu0 0.0
        %932 = vmatprep.subr.mxu0 0.0
        %933 = vmatpush1.xpose.msra.mxu0 0.0
        %934 = vmatprep.subr.mxu0 0.0
        %935 = vmatpush1.xpose.msra.mxu0 0.0
        %936 = vmatprep.subr.mxu0 0.0
        %937 = vmatpush1.xpose.msra.mxu0 0.0
        %938 = vmatprep.subr.mxu0 0.0
        %939 = vmatpush1.xpose.msra.mxu0 0.0
        %940 = vmatprep.subr.mxu0 0.0
        %941 = vmatpush1.xpose.msra.mxu0 0.0
        %942 = vmatprep.subr.mxu0 0.0
        %943 = vmatpush1.xpose.msra.mxu0 0.0
        %944 = vmatprep.subr.mxu0 0.0
        %945 = vmatpush1.xpose.msra.mxu0 0.0
        %946 = vmatprep.subr.mxu0 0.0
        %947 = vmatpush1.xpose.msra.mxu0 %v914
        %948 = vmatprep.subr.mxu0 0.0
        %949 = vmatpush2.xpose.msra.mxu0 0.0
        %950 = vmatprep.subr.mxu0 0.0
        %951 = vmatpush2.xpose.msra.mxu0 0.0
        %952 = vmatprep.subr.mxu0 0.0
        %953 = vmatpush2.xpose.msra.mxu0 0.0
        %954 = vmatprep.subr.mxu0 0.0
        %955 = vmatpush2.xpose.msra.mxu0 0.0
        %956 = vmatprep.subr.mxu0 0.0
        %957 = vmatpush2.xpose.msra.mxu0 0.0
        %958 = vmatprep.subr.mxu0 0.0
        %959 = vmatpush2.xpose.msra.mxu0 0.0
        %960 = vmatprep.subr.mxu0 0.0
        %961 = vmatpush2.xpose.msra.mxu0 0.0
        %962 = vmatprep.subr.mxu0 0.0
        %963 = vmatpush2.xpose.msra.mxu0 0.0
        %964 = vmatprep.subr.mxu0 0.0
        %965 = vmatpush2.xpose.msra.mxu0 0.0
        %966 = vmatprep.subr.mxu0 0.0
        %967 = vmatpush2.xpose.msra.mxu0 0.0
        %968 = vmatprep.subr.mxu0 0.0
        %969 = vmatpush2.xpose.msra.mxu0 0.0
        %970 = vmatprep.subr.mxu0 0.0
        %971 = vmatpush2.xpose.msra.mxu0 0.0
        %972 = vmatprep.subr.mxu0 0.0
        %973 = vmatpush2.xpose.msra.mxu0 0.0
        %974 = vmatprep.subr.mxu0 0.0
        %975 = vmatpush2.xpose.msra.mxu0 0.0
        %976 = vmatprep.subr.mxu0 0.0
        %977 = vmatpush2.xpose.msra.mxu0 0.0
        %978 = vmatprep.subr.mxu0 0.0
        %979 = vmatpush2.xpose.msra.mxu0 0.0
        %980 = vmatprep.mubr.f32.mxu0 0.0
        %981 = vmatmul.mubr.f32.gmra.mxu0 %v911
        %v982 = vpop.f32.mrf.mxu0
        %v983 = vadd.f32 0.0, %v982
        %v984 = vpop.f32.mrf.mxu0
        %985 = vdwg.mxu0
        %v986 = vld [vmem:[#allocation2] sm:$0x1]
        %988 = vset.pattern.permute.xlu0 0
        %989 = vperm.xlu0 %988, %v986
        %v990 = vpop.permute.xlu0 %989
        %v992 = vlaneseq
        %v993 = vshrl.u32 %v992, 7
        %v994 = vsub.s32 0, %v993
        %v995 = vrot.slane %v990, %v994
        %v996 = vadd.f32 %v983, %v995
        %vm997 = vcmask 57344
        %998 = vst.msk [vmem:[%s536] sm:$0x1] %vm997, %v996
        %s999 = sand.u32 %s305, 1
        %s1000 = scalar_lea.sflag [#allocation5], %s999
        %s1001 = sand.u32 %s305, 1
        %s1002 = scalar_lea.vmem [#allocation17], %s1001
        // Predicated region
        $region101: #{tpu_custom_call.1} parent=67 // pred_check
          %p1003 = pneg %p315
        $region102: #{tpu_custom_call.1} parent=67 // pred_check_branch
          %1005 = sbr.rel (%p1003) target = $region104
        $region103: #{tpu_custom_call.1} parent=67 // pred_region
          %s1007 = ssub.s32 16, 16
          %1008 = vsyncadd %s1000, %s1007
          %s1009 = smul.addr %s35, 16
          %s1010 = scalar_lea.hbm %s12, %s1009
          %s1012 = sshll.u32 %s1002, 4
          %s1013 = int_to_ptr.vmem [resolvable:$true] %s1012
          %1015 = dma.vmem_to_hbm [thread:$0]  %s1013, 16, %s1010, %s1000
        $region104: #{tpu_custom_call.1} parent=67 // pred_fallthru
          _
      $region68: #{tpu_custom_call.1} parent=5 // pred_fallthru
        _
      %p1016 = scmp.le.s32.totalorder 2, %s30
      // Predicated region
      $region105: #{tpu_custom_call.1} parent=5 // pred_check
        %p1017 = pneg %p1016
      $region106: #{tpu_custom_call.1} parent=5 // pred_check_branch
        %1019 = sbr.rel (%p1017) target = $region108
      $region107: #{tpu_custom_call.1} parent=5 // pred_region
        %s1020 = ssub.s32 %s30, 2
        // Predicated region
        $region109: #{tpu_custom_call.1} parent=107 // pred_check
          %p1021 = pneg %p321
        $region110: #{tpu_custom_call.1} parent=107 // pred_check_branch
          %1023 = sbr.rel (%p1021) target = $region112
        $region111: #{tpu_custom_call.1} parent=107 // pred_region
          %s1024 = sand.u32 %s306, 1
          %s1025 = scalar_lea.sflag [#allocation5], %s1024
          %s1026 = sand.u32 %s306, 1
          %s1027 = scalar_lea.vmem [#allocation17], %s1026
          %1028 = dma.done %s1025, 16
        $region112: #{tpu_custom_call.1} parent=107 // pred_fallthru
          _
      $region108: #{tpu_custom_call.1} parent=5 // pred_fallthru
        _
    $region6: #{tpu_custom_call.1} parent=1 // loop_footer
      %s34 = sadd.s32 1, %s30
    $region7: #{tpu_custom_call.1} parent=1 // loop_footer_branch
      %29 = sbr.rel target = $region3
    $region8: #{tpu_custom_call.1} parent=1 // loop_exit
      _
    %1029 = vsyncpa [#allocation4], 1
    %s1030 = scalar_lea.sflag [#allocation4], 1
    %1031 = vsyncpa %s1030, 1
    %1032 = vsyncpa [#allocation7], 1
    %1033 = vsyncpa [#allocation10], 1
    %1034 = vsyncpa [#allocation13], 1
    %1035 = vsyncpa [#allocation16], 1
    %1036 = vsyncpa [#allocation5], 1
    %s1037 = scalar_lea.sflag [#allocation5], 1
    %1038 = vsyncpa %s1037, 1

</llo_original>
